<compile_context>
chip_gen: v5e
topology: v5e:2x2
jax: 0.10.0
libtpu: 0.0.40
codegen_flags: <defaults>
</compile_context>

<pallas_src>
import functools
from types import SimpleNamespace

import jax
import jax.numpy as jnp
from jax import lax
from jax.experimental import pallas as pl
from jax.experimental.pallas import tpu as pltpu


def _round_up(x, m):
    return (x + m - 1) // m * m


# ---------------------------------------------------------------------------
# Pallas kernels: stride-1 VALID conv over one (C_out tile, L tile) block.
# ---------------------------------------------------------------------------
def _conv1d_im2col_kernel(x_ref, h_ref, w_ref, b_ref, o_ref, cols_ref,
                          *, K, Lt, Cin_p):
    # Small-Cin path: fold the K taps into the MXU contraction dim.
    # x_ref:    (1, Cin_p, Lt)        main body of this L tile   (compute dtype)
    # h_ref:    (1, 1, Cin_p, K-1)    right halo of this L tile  (compute dtype)
    # w_ref:    (Ct, K*Cin_p)         im2col weight, cols = (tap k, in-ch ci)
    # b_ref:    (Ct, 1)               bias (f32)
    # o_ref:    (1, Ct, Lt)           output tile
    # cols_ref: (K*Cin_p, Lt)         VMEM scratch: im2col matrix
    xv = x_ref.at[0]            # (Cin_p, Lt)   ref views, no staging copy
    hv = h_ref.at[0, 0]         # (Cin_p, K-1)
    cols_ref[0:Cin_p, :] = xv[...]
    for k in range(1, K):       # K is small and static -> fully unrolled
        cols_ref[k * Cin_p:(k + 1) * Cin_p, :Lt - k] = xv[:, k:]
        cols_ref[k * Cin_p:(k + 1) * Cin_p, Lt - k:] = hv[:, :k]
    acc = jnp.dot(w_ref[...], cols_ref[...], preferred_element_type=jnp.float32)
    o_ref[0] = (acc + b_ref[...]).astype(o_ref.dtype)  # bias add stays f32 (VPU)


def _conv1d_direct_kernel(x_ref, h_ref, w_ref, b_ref, o_ref, win_ref, acc_ref,
                          *, K, Lt, Cin_p):
    # Large-Cin path (Cin_p >= 256): contraction per tap already fills the MXU,
    # so skip im2col entirely (no K*Cin_p*Lt scratch / stores).
    # win_ref: (Cin_p, Lt+K-1) VMEM scratch;  acc_ref: (Ct, Lt) f32 scratch.
    win_ref[:, :Lt] = x_ref[0]
    win_ref[:, Lt:] = h_ref[0, 0]
    acc_ref[...] = jnp.dot(w_ref[:, 0:Cin_p], win_ref[:, 0:Lt],
                           preferred_element_type=jnp.float32)
    for k in range(1, K):
        acc_ref[...] += jnp.dot(w_ref[:, k * Cin_p:(k + 1) * Cin_p],
                                win_ref[:, k:k + Lt],
                                preferred_element_type=jnp.float32)
    o_ref[0] = (acc_ref[...] + b_ref[...]).astype(o_ref.dtype)


# ---------------------------------------------------------------------------
# Weight prep (hoisted to __init__): phase-fold stride, pad channels, im2col.
# ---------------------------------------------------------------------------
def _prep_conv_weight(w, b, stride, compute_dtype):
    """w: (C_out, C_in, K) direct-conv (cross-correlation) weight, b: (C_out,).

    A stride-S conv is re-expressed as a stride-1 conv over the S de-interleaved
    input phases (in-channels become S*C_in, taps become ceil(K/S)) so the
    kernel never issues strided lane loads.
    """
    C_out, C_in, K = w.shape
    S = int(stride)
    if S > 1:
        Kp = -(-K // S)
        w = jnp.pad(w, ((0, 0), (0, 0), (0, Kp * S - K)))
        # [co, ci, j, p] = w[co, ci, j*S + p]  ->  row index p*C_in + ci
        w = jnp.transpose(w.reshape(C_out, C_in, Kp, S), (0, 3, 1, 2))
        w = w.reshape(C_out, S * C_in, Kp)
        C_in_eff, K_eff = S * C_in, Kp
    else:
        C_in_eff, K_eff = C_in, K
    if K_eff == 1:  # keep a non-empty halo: add one zero tap
        w = jnp.pad(w, ((0, 0), (0, 0), (0, 1)))
        K_eff = 2

    gran = 8 * 4 // jnp.dtype(compute_dtype).itemsize  # 8 for f32, 16 for bf16
    C_in_p = _round_up(C_in_eff, gran)
    C_out_p = _round_up(C_out, gran)
    if C_out_p <= 256:
        cout_tile = C_out_p
    elif C_out_p % 256 == 0:
        cout_tile = 256            # matches v6e/v7x 2x256^2 MXU output width
    else:
        cout_tile = 128
        C_out_p = _round_up(C_out_p, 128)
    w = jnp.pad(w, ((0, C_out_p - C_out), (0, C_in_p - C_in_eff), (0, 0)))
    # im2col layout: columns of x are (tap k major, in-channel minor);
    # weight kept as (M, K_contract) so the matmul is canonical (no vxpose).
    w2d = jnp.transpose(w, (0, 2, 1)).reshape(C_out_p, K_eff * C_in_p)
    w2d = w2d.astype(compute_dtype)
    b2 = jnp.pad(b, (0, C_out_p - C_out)).reshape(C_out_p, 1).astype(jnp.float32)
    return SimpleNamespace(w2d=w2d, b2=b2, stride=S, K=K_eff, K_orig=K,
                           C_in=C_in, C_in_eff=C_in_eff, C_in_p=C_in_p,
                           C_out=C_out, C_out_p=C_out_p, cout_tile=cout_tile,
                           dtype=compute_dtype)


# ---------------------------------------------------------------------------
# Wrapper: tiling, halo split, padding, pallas_call.
# ---------------------------------------------------------------------------
def conv1d_pallas(x, wp, *, l_tile=512, pad_lr=(0, 0)):
    """x: (N, C_in, L) -> (N, C_out, L_out), wp from _prep_conv_weight.

    pad_lr = (left, right) zero-padding on the length axis, folded into the
    wrapper's single pad (so the caller does not make an extra HBM pass).
    Grid = (batch, C_out tiles, L tiles) with L innermost so the weight tile
    stays VMEM-resident across the inner loop.
    """
    N, C_in, L = x.shape
    assert C_in == wp.C_in, (C_in, wp.C_in)
    S, K = wp.stride, wp.K
    pad_l, pad_r = pad_lr
    L_in = L + pad_l + pad_r
    L_out = (L_in - wp.K_orig) // S + 1
    out_dtype = x.dtype

    xs = x.astype(wp.dtype)
    if S > 1:
        # de-interleave stride phases: xs[n, p*C_in + ci, t] = x_pad[n, ci, t*S + p]
        T = L_out + K - 1
        need = T * S
        right = max(0, need - (L + pad_l))
        xs = jnp.pad(xs, ((0, 0), (0, 0), (pad_l, right)))[:, :, :need]
        xs = xs.reshape(N, C_in, T, S).transpose(0, 3, 1, 2).reshape(N, S * C_in, T)
        pad_l_eff = 0
    else:
        pad_l_eff = pad_l

    # tile geometry: lane-dense output tiles (multiple of 128).
    Lt = _round_up(min(l_tile, _round_up(L_out, 128)), 128)
    n_lt = pl.cdiv(L_out, Lt)
    Lpad = n_lt * Lt
    Ct = wp.cout_tile
    n_ct = wp.C_out_p // Ct
    assert K - 1 <= Lt and wp.K_orig <= Lt, (K, wp.K_orig, Lt)

    # One pad covers: caller's left pad, channel pad to the sublane granule,
    # and right pad to (n_lt+1)*Lt so every tile has a full (K-1)-wide halo.
    total = (n_lt + 1) * Lt
    cur_c, cur_l = xs.shape[1], xs.shape[2]
    xs = jnp.pad(xs, ((0, 0), (0, wp.C_in_p - cur_c),
                      (pad_l_eff, max(0, total - (cur_l + pad_l_eff)))))
    xs = xs[:, :, :total]
    # Halos via strided reshape (disjoint windows) — no gather pass.
    x_halo = xs.reshape(N, wp.C_in_p, n_lt + 1, Lt)[:, :, 1:, :K - 1]
    x_halo = jnp.transpose(x_halo, (0, 2, 1, 3))        # (N, n_lt, Cin_p, K-1)

    use_direct = wp.C_in_p >= 256
    if use_direct:
        kernel = functools.partial(_conv1d_direct_kernel, K=K, Lt=Lt, Cin_p=wp.C_in_p)
        scratch = [pltpu.VMEM((wp.C_in_p, Lt + K - 1), wp.dtype),
                   pltpu.VMEM((Ct, Lt), jnp.float32)]
        scratch_bytes = (wp.C_in_p * (Lt + K - 1) * jnp.dtype(wp.dtype).itemsize
                         + Ct * Lt * 4)
    else:
        kernel = functools.partial(_conv1d_im2col_kernel, K=K, Lt=Lt, Cin_p=wp.C_in_p)
        scratch = [pltpu.VMEM((K * wp.C_in_p, Lt), wp.dtype)]
        scratch_bytes = K * wp.C_in_p * Lt * jnp.dtype(wp.dtype).itemsize

    # Explicit VMEM budget: 2x (double-buffered) operands + scratch + headroom.
    itm = jnp.dtype(wp.dtype).itemsize
    per_step = (wp.C_in_p * Lt * itm                    # x tile
                + wp.C_in_p * (K - 1) * itm             # halo
                + Ct * K * wp.C_in_p * itm              # weight tile
                + Ct * 4                                # bias
                + Ct * Lt * jnp.dtype(out_dtype).itemsize)   # out tile
    vmem_bytes = 2 * per_step + scratch_bytes
    vmem_limit = int(min(max(1.25 * vmem_bytes + (4 << 20), 32 << 20), 64 << 20))

    # Grid order: L tiles innermost so the weight block stays resident.
    # If batch and C_out-tile extents are both 1, lead with L tiles so the
    # second TensorCore (v7x) still gets work.
    maps = dict(x=lambda n, c, l: (n, 0, l),
                h=lambda n, c, l: (n, l, 0, 0),
                w=lambda n, c, l: (c, 0),
                b=lambda n, c, l: (c, 0),
                o=lambda n, c, l: (n, c, l))
    if N * n_ct == 1:
        grid = (n_lt, N, n_ct)
        wrap = lambda f: (lambda l, n, c: f(n, c, l))
    else:
        grid = (N, n_ct, n_lt)
        wrap = lambda f: f

    out = pl.pallas_call(
        kernel,
        out_shape=jax.ShapeDtypeStruct((N, wp.C_out_p, Lpad), out_dtype),
        grid=grid,
        in_specs=[
            pl.BlockSpec((1, wp.C_in_p, Lt), wrap(maps["x"])),
            pl.BlockSpec((1, 1, wp.C_in_p, K - 1), wrap(maps["h"])),
            pl.BlockSpec((Ct, K * wp.C_in_p), wrap(maps["w"])),
            pl.BlockSpec((Ct, 1), wrap(maps["b"])),
        ],
        out_specs=pl.BlockSpec((1, Ct, Lt), wrap(maps["o"])),
        scratch_shapes=scratch,
        compiler_params=pltpu.CompilerParams(
            dimension_semantics=("parallel", "parallel", "parallel"),
            vmem_limit_bytes=vmem_limit),
    )(xs, x_halo, wp.w2d, wp.b2)
    return out[:, :wp.C_out, :L_out]


# ---------------------------------------------------------------------------
# Module: parameters + forward glue.
# ---------------------------------------------------------------------------
class Transpose1dLayerMultiInput:
    """JAX/Pallas port of Transpose1dLayer_multi_input (cond_pulse2pulse)."""

    def __init__(self, in_channels, out_channels, kernel_size, stride,
                 padding=11, upsample=None, output_padding=1, *, key,
                 compute_dtype=jnp.bfloat16, l_tile=512):
        self.in_channels = in_channels
        self.out_channels = out_channels
        self.kernel_size = kernel_size
        self.stride = stride
        self.padding = padding
        self.output_padding = output_padding
        if upsample:
            assert float(upsample).is_integer(), "non-integer upsample not supported"
        self.upsample = upsample
        self.compute_dtype = compute_dtype
        self.l_tile = l_tile

        k1, k2, k3, k4 = jax.random.split(key, 4)
        # nn.Conv1d(in_channels, out_channels, K, stride): weight (C_out, C_in, K)
        bound = 1.0 / float(in_channels * kernel_size) ** 0.5
        self.conv_w = jax.random.uniform(
            k1, (out_channels, in_channels, kernel_size), jnp.float32, -bound, bound)
        self.conv_b = jax.random.uniform(
            k2, (out_channels,), jnp.float32, -bound, bound)
        # nn.ConvTranspose1d(in_channels, out_channels, K, S, P, OP): weight (C_in, C_out, K)
        bound_t = 1.0 / float(out_channels * kernel_size) ** 0.5
        self.convt_w = jax.random.uniform(
            k3, (in_channels, out_channels, kernel_size), jnp.float32, -bound_t, bound_t)
        self.convt_b = jax.random.uniform(
            k4, (out_channels,), jnp.float32, -bound_t, bound_t)

        # hoisted weight prep (im2col layouts, phase folding) — done once here.
        self.conv_prep = _prep_conv_weight(self.conv_w, self.conv_b,
                                           self.stride, compute_dtype)
        self.convt_prep, self.pp_base, self.pp_taps = self._build_polyphase()

    def _build_polyphase(self):
        """ConvTranspose1d(K,S,P,OP) == interleave of S stride-1 convs.

        Output phase m0 = m % S only uses taps k ≡ (m0+P) (mod S); the S phase
        sub-kernels are stacked along C_out so the whole transposed conv is a
        single stride-1 conv (no zero-insertion) followed by a lane interleave.
        """
        K, S, P = self.kernel_size, self.stride, self.padding
        C_in, C_out = self.in_channels, self.out_channels
        r = [(m0 + P) % S for m0 in range(S)]
        U = [(-(-(K - r[m0]) // S)) if K > r[m0] else 0 for m0 in range(S)]
        e = [(m0 + P) // S for m0 in range(S)]
        base = [e[m0] - U[m0] + 1 for m0 in range(S)]
        base_min = min(b for b, u in zip(base, U) if u > 0)
        U_tot = max(e[m0] + 1 - base_min for m0 in range(S) if U[m0] > 0)
        w_stack = jnp.zeros((S * C_out, C_in, U_tot), jnp.float32)
        for m0 in range(S):
            if U[m0] == 0:
                continue
            shift = base[m0] - base_min
            for v in range(U[m0]):
                k = r[m0] + (U[m0] - 1 - v) * S
                w_stack = w_stack.at[m0 * C_out:(m0 + 1) * C_out, :, shift + v].set(
                    self.convt_w[:, :, k].T)
        b_stack = jnp.tile(self.convt_b, S)
        prep = _prep_conv_weight(w_stack, b_stack, 1, self.compute_dtype)
        return prep, base_min, U_tot

    def __call__(self, x, in_feature):
        if self.upsample:
            # torch.cat((x, in_feature), 1) -> Upsample(nearest) -> ConstantPad1d -> Conv1d
            # The ConstantPad1d is folded into the kernel wrapper's single pad.
            # TODO(synk): fold concat + nearest-upsample into the conv weights
            # (polyphase) so no pre-pass over the activation is needed.
            xc = jnp.concatenate([x, in_feature], axis=1)
            xu = jnp.repeat(xc, int(self.upsample), axis=-1)
            rp = self.kernel_size // 2
            return conv1d_pallas(xu, self.conv_prep, l_tile=self.l_tile,
                                 pad_lr=(rp, rp))
        else:
            # nn.ConvTranspose1d via polyphase (no zero-insertion).
            N, _, L = x.shape
            K, S, P, OP = (self.kernel_size, self.stride, self.padding,
                           self.output_padding)
            L_out = (L - 1) * S - 2 * P + K + OP
            Lq = -(-L_out // S)                       # outputs per phase
            lo = self.pp_base                         # first input index needed
            hi = Lq - 1 + self.pp_base + self.pp_taps - 1
            pad_l, pad_r = max(0, -lo), max(0, hi - (L - 1))
            xw = jnp.pad(x, ((0, 0), (0, 0), (pad_l, pad_r)))
            xw = xw[:, :, lo + pad_l: lo + pad_l + Lq + self.pp_taps - 1]
            y = conv1d_pallas(xw, self.convt_prep, l_tile=self.l_tile)  # (N, S*C_out, Lq)
            # TODO(synk): emit the output pre-interleaved from the kernel to
            # avoid this extra full-output reshape/transpose pass.
            y = y.reshape(N, S, self.out_channels, Lq)
            y = jnp.transpose(y, (0, 2, 3, 1)).reshape(N, self.out_channels, Lq * S)
            return y[:, :, :L_out]


# ---------------------------------------------------------------------------
# Pure-JAX (lax.conv) reference with matching operand rounding.
# ---------------------------------------------------------------------------
def ref_forward(layer, x, in_feature):
    dn = ("NCH", "OIH", "NCH")
    cd = layer.compute_dtype
    if layer.upsample:
        xc = jnp.concatenate([x, in_feature], axis=1)
        xu = jnp.repeat(xc, int(layer.upsample), axis=-1)
        rp = layer.kernel_size // 2
        xp = jnp.pad(xu, ((0, 0), (0, 0), (rp, rp)))
        out = lax.conv_general_dilated(
            xp.astype(cd), layer.conv_w.astype(cd), (layer.stride,), "VALID",
            dimension_numbers=dn, preferred_element_type=jnp.float32)
        return out + layer.conv_b[None, :, None]
    else:
        K, P, OP, S = (layer.kernel_size, layer.padding, layer.output_padding,
                       layer.stride)
        w_eq = jnp.flip(jnp.transpose(layer.convt_w, (1, 0, 2)), axis=-1)
        out = lax.conv_general_dilated(
            x.astype(cd), w_eq.astype(cd), (1,),
            [(K - 1 - P, K - 1 - P + OP)], lhs_dilation=(S,),
            dimension_numbers=dn, preferred_element_type=jnp.float32)
        return out + layer.convt_b[None, :, None]


if __name__ == "__main__":
    key = jax.random.PRNGKey(0)
    kx, kf, kp1, kp2, kp3, kp4, kbx, kbf = jax.random.split(key, 8)

    x = jax.random.normal(kx, (2, 4, 16), jnp.float32)
    in_feature = jax.random.normal(kf, (2, 4, 16), jnp.float32)
    xt = jax.random.normal(kx, (2, 8, 16), jnp.float32)
    # wide-channel inputs to exercise the direct (no-im2col) MXU path
    xb = jax.random.normal(kbx, (2, 128, 16), jnp.float32)
    fb = jax.random.normal(kbf, (2, 128, 16), jnp.float32)

    for cd, tol in ((jnp.float32, 1e-4), (jnp.bfloat16, 2e-3)):
        # ---- upsample (multi-input) branch: in_channels = 4 (x) + 4 (feat) ----
        layer_up = Transpose1dLayerMultiInput(
            8, 6, 5, 1, padding=2, upsample=2, output_padding=1,
            key=kp1, compute_dtype=cd)
        out_up = jax.block_until_ready(layer_up(x, in_feature))
        ref_up = ref_forward(layer_up, x, in_feature)
        assert out_up.shape == (2, 6, 32), out_up.shape
        assert jnp.allclose(out_up, ref_up, atol=tol, rtol=tol), (
            "upsample", str(cd), float(jnp.abs(out_up - ref_up).max()))

        # ---- upsample branch with stride=2 (exercises phase de-interleave) ----
        layer_s2 = Transpose1dLayerMultiInput(
            8, 6, 5, 2, padding=2, upsample=2, output_padding=1,
            key=kp3, compute_dtype=cd)
        out_s2 = jax.block_until_ready(layer_s2(x, in_feature))
        ref_s2 = ref_forward(layer_s2, x, in_feature)
        assert out_s2.shape == (2, 6, 16), out_s2.shape
        assert jnp.allclose(out_s2, ref_s2, atol=tol, rtol=tol), (
            "upsample_s2", str(cd), float(jnp.abs(out_s2 - ref_s2).max()))

        # ---- ConvTranspose1d branch (upsample=None), stride 2, polyphase ----
        layer_tr = Transpose1dLayerMultiInput(
            8, 6, 5, 2, padding=2, upsample=None, output_padding=1,
            key=kp2, compute_dtype=cd)
        out_tr = jax.block_until_ready(layer_tr(xt, in_feature))
        ref_tr = ref_forward(layer_tr, xt, in_feature)
        assert out_tr.shape == (2, 6, 32), out_tr.shape
        assert jnp.allclose(out_tr, ref_tr, atol=tol, rtol=tol), (
            "convtranspose", str(cd), float(jnp.abs(out_tr - ref_tr).max()))

        # ---- wide-channel upsample branch (exercises the direct MXU path) ----
        layer_wd = Transpose1dLayerMultiInput(
            256, 8, 5, 1, padding=2, upsample=2, output_padding=1,
            key=kp4, compute_dtype=cd)
        out_wd = jax.block_until_ready(layer_wd(xb, fb))
        ref_wd = ref_forward(layer_wd, xb, fb)
        assert out_wd.shape == (2, 8, 32), out_wd.shape
        assert jnp.allclose(out_wd, ref_wd, atol=tol, rtol=tol), (
            "upsample_wide", str(cd), float(jnp.abs(out_wd - ref_wd).max()))

    print("KERNEL_OK")
</pallas_src>

<mosaic_0001>
module attributes {stable_mosaic.version = 11 : i64} {
  func.func @_conv1d_im2col_kernel(%arg0: i32, %arg1: i32, %arg2: i32, %arg3: memref<1x8x128xf32, #tpu.memory_space<vmem>>, %arg4: memref<1x1x8x4xf32, #tpu.memory_space<vmem>>, %arg5: memref<8x40xf32, #tpu.memory_space<vmem>>, %arg6: memref<8x1xf32, #tpu.memory_space<vmem>>, %arg7: memref<1x8x128xf32, #tpu.memory_space<vmem>>, %arg8: memref<40x128xf32, #tpu.memory_space<vmem>>) attributes {dimension_semantics = [#tpu.dimension_semantics<parallel>, #tpu.dimension_semantics<parallel>, #tpu.dimension_semantics<parallel>], iteration_bounds = array<i64: 2, 1, 1>, scalar_prefetch = 0 : i64, scratch_operands = 1 : i64, tpu.core_type = #tpu.core_type<tc>, window_params = [{transform_indices = @transform_0, window_bounds = array<i64: 1, 8, 128>}, {transform_indices = @transform_1, window_bounds = array<i64: 1, 1, 8, 4>}, {transform_indices = @transform_2, window_bounds = array<i64: 8, 40>}, {transform_indices = @transform_3, window_bounds = array<i64: 8, 1>}, {transform_indices = @transform_4, window_bounds = array<i64: 1, 8, 128>}]} {
    %c0 = arith.constant 0 : index
    %c0_0 = arith.constant 0 : index
    %c0_1 = arith.constant 0 : index
    %0 = vector.load %arg3[%c0, %c0_0, %c0_1] : memref<1x8x128xf32, #tpu.memory_space<vmem>>, vector<1x8x128xf32>
    %1 = vector.shape_cast %0 : vector<1x8x128xf32> to vector<8x128xf32>
    %c0_2 = arith.constant 0 : index
    %c0_3 = arith.constant 0 : index
    %2 = vector.load %arg8[%c0_2, %c0_3] : memref<40x128xf32, #tpu.memory_space<vmem>>, vector<8x128xf32>
    tpu.vector_store %arg8[%c0_2, %c0_3], %1 {strides = array<i32>} : memref<40x128xf32, #tpu.memory_space<vmem>>, vector<8x128xf32>,
    %c0_i32 = arith.constant 0 : i32
    %c0_i32_4 = arith.constant 0 : i32
    %c0_i32_5 = arith.constant 0 : i32
    %3 = tpu.memref_slice %arg3[%c0_i32, %c0_i32_4, %c0_i32_5] : memref<1x8x128xf32, #tpu.memory_space<vmem>> -> memref<1x8x128xf32, #tpu.memory_space<vmem>>
    %4 = tpu.memref_squeeze %3 : memref<1x8x128xf32, #tpu.memory_space<vmem>> -> memref<8x128xf32, #tpu.memory_space<vmem>>
    %c0_6 = arith.constant 0 : index
    %c1 = arith.constant 1 : index
    %5 = vector.load %4[%c0_6, %c1] : memref<8x128xf32, #tpu.memory_space<vmem>>, vector<8x127xf32>
    %c8 = arith.constant 8 : index
    %c0_7 = arith.constant 0 : index
    %6 = vector.load %arg8[%c8, %c0_7] : memref<40x128xf32, #tpu.memory_space<vmem>>, vector<8x127xf32>
    tpu.vector_store %arg8[%c8, %c0_7], %5 {strides = array<i32>} : memref<40x128xf32, #tpu.memory_space<vmem>>, vector<8x127xf32>,
    %c0_i32_8 = arith.constant 0 : i32
    %c0_i32_9 = arith.constant 0 : i32
    %c0_i32_10 = arith.constant 0 : i32
    %c0_i32_11 = arith.constant 0 : i32
    %7 = tpu.memref_slice %arg4[%c0_i32_8, %c0_i32_9, %c0_i32_10, %c0_i32_11] : memref<1x1x8x4xf32, #tpu.memory_space<vmem>> -> memref<1x1x8x4xf32, #tpu.memory_space<vmem>>
    %8 = tpu.memref_squeeze %7 : memref<1x1x8x4xf32, #tpu.memory_space<vmem>> -> memref<8x4xf32, #tpu.memory_space<vmem>>
    %c0_12 = arith.constant 0 : index
    %c0_13 = arith.constant 0 : index
    %9 = vector.load %8[%c0_12, %c0_13] : memref<8x4xf32, #tpu.memory_space<vmem>>, vector<8x1xf32>
    %c8_14 = arith.constant 8 : index
    %c127 = arith.constant 127 : index
    %10 = vector.load %arg8[%c8_14, %c127] : memref<40x128xf32, #tpu.memory_space<vmem>>, vector<8x1xf32>
    tpu.vector_store %arg8[%c8_14, %c127], %9 {strides = array<i32>} : memref<40x128xf32, #tpu.memory_space<vmem>>, vector<8x1xf32>,
    %c0_i32_15 = arith.constant 0 : i32
    %c0_i32_16 = arith.constant 0 : i32
    %c0_i32_17 = arith.constant 0 : i32
    %11 = tpu.memref_slice %arg3[%c0_i32_15, %c0_i32_16, %c0_i32_17] : memref<1x8x128xf32, #tpu.memory_space<vmem>> -> memref<1x8x128xf32, #tpu.memory_space<vmem>>
    %12 = tpu.memref_squeeze %11 : memref<1x8x128xf32, #tpu.memory_space<vmem>> -> memref<8x128xf32, #tpu.memory_space<vmem>>
    %c0_18 = arith.constant 0 : index
    %c2 = arith.constant 2 : index
    %13 = vector.load %12[%c0_18, %c2] : memref<8x128xf32, #tpu.memory_space<vmem>>, vector<8x126xf32>
    %c16 = arith.constant 16 : index
    %c0_19 = arith.constant 0 : index
    %14 = vector.load %arg8[%c16, %c0_19] : memref<40x128xf32, #tpu.memory_space<vmem>>, vector<8x126xf32>
    tpu.vector_store %arg8[%c16, %c0_19], %13 {strides = array<i32>} : memref<40x128xf32, #tpu.memory_space<vmem>>, vector<8x126xf32>,
    %c0_i32_20 = arith.constant 0 : i32
    %c0_i32_21 = arith.constant 0 : i32
    %c0_i32_22 = arith.constant 0 : i32
    %c0_i32_23 = arith.constant 0 : i32
    %15 = tpu.memref_slice %arg4[%c0_i32_20, %c0_i32_21, %c0_i32_22, %c0_i32_23] : memref<1x1x8x4xf32, #tpu.memory_space<vmem>> -> memref<1x1x8x4xf32, #tpu.memory_space<vmem>>
    %16 = tpu.memref_squeeze %15 : memref<1x1x8x4xf32, #tpu.memory_space<vmem>> -> memref<8x4xf32, #tpu.memory_space<vmem>>
    %c0_24 = arith.constant 0 : index
    %c0_25 = arith.constant 0 : index
    %17 = vector.load %16[%c0_24, %c0_25] : memref<8x4xf32, #tpu.memory_space<vmem>>, vector<8x2xf32>
    %c16_26 = arith.constant 16 : index
    %c126 = arith.constant 126 : index
    %18 = vector.load %arg8[%c16_26, %c126] : memref<40x128xf32, #tpu.memory_space<vmem>>, vector<8x2xf32>
    tpu.vector_store %arg8[%c16_26, %c126], %17 {strides = array<i32>} : memref<40x128xf32, #tpu.memory_space<vmem>>, vector<8x2xf32>,
    %c0_i32_27 = arith.constant 0 : i32
    %c0_i32_28 = arith.constant 0 : i32
    %c0_i32_29 = arith.constant 0 : i32
    %19 = tpu.memref_slice %arg3[%c0_i32_27, %c0_i32_28, %c0_i32_29] : memref<1x8x128xf32, #tpu.memory_space<vmem>> -> memref<1x8x128xf32, #tpu.memory_space<vmem>>
    %20 = tpu.memref_squeeze %19 : memref<1x8x128xf32, #tpu.memory_space<vmem>> -> memref<8x128xf32, #tpu.memory_space<vmem>>
    %c0_30 = arith.constant 0 : index
    %c3 = arith.constant 3 : index
    %21 = vector.load %20[%c0_30, %c3] : memref<8x128xf32, #tpu.memory_space<vmem>>, vector<8x125xf32>
    %c24 = arith.constant 24 : index
    %c0_31 = arith.constant 0 : index
    %22 = vector.load %arg8[%c24, %c0_31] : memref<40x128xf32, #tpu.memory_space<vmem>>, vector<8x125xf32>
    tpu.vector_store %arg8[%c24, %c0_31], %21 {strides = array<i32>} : memref<40x128xf32, #tpu.memory_space<vmem>>, vector<8x125xf32>,
    %c0_i32_32 = arith.constant 0 : i32
    %c0_i32_33 = arith.constant 0 : i32
    %c0_i32_34 = arith.constant 0 : i32
    %c0_i32_35 = arith.constant 0 : i32
    %23 = tpu.memref_slice %arg4[%c0_i32_32, %c0_i32_33, %c0_i32_34, %c0_i32_35] : memref<1x1x8x4xf32, #tpu.memory_space<vmem>> -> memref<1x1x8x4xf32, #tpu.memory_space<vmem>>
    %24 = tpu.memref_squeeze %23 : memref<1x1x8x4xf32, #tpu.memory_space<vmem>> -> memref<8x4xf32, #tpu.memory_space<vmem>>
    %c0_36 = arith.constant 0 : index
    %c0_37 = arith.constant 0 : index
    %25 = vector.load %24[%c0_36, %c0_37] : memref<8x4xf32, #tpu.memory_space<vmem>>, vector<8x3xf32>
    %c24_38 = arith.constant 24 : index
    %c125 = arith.constant 125 : index
    %26 = vector.load %arg8[%c24_38, %c125] : memref<40x128xf32, #tpu.memory_space<vmem>>, vector<8x3xf32>
    tpu.vector_store %arg8[%c24_38, %c125], %25 {strides = array<i32>} : memref<40x128xf32, #tpu.memory_space<vmem>>, vector<8x3xf32>,
    %c0_i32_39 = arith.constant 0 : i32
    %c0_i32_40 = arith.constant 0 : i32
    %c0_i32_41 = arith.constant 0 : i32
    %27 = tpu.memref_slice %arg3[%c0_i32_39, %c0_i32_40, %c0_i32_41] : memref<1x8x128xf32, #tpu.memory_space<vmem>> -> memref<1x8x128xf32, #tpu.memory_space<vmem>>
    %28 = tpu.memref_squeeze %27 : memref<1x8x128xf32, #tpu.memory_space<vmem>> -> memref<8x128xf32, #tpu.memory_space<vmem>>
    %c0_42 = arith.constant 0 : index
    %c4 = arith.constant 4 : index
    %29 = vector.load %28[%c0_42, %c4] : memref<8x128xf32, #tpu.memory_space<vmem>>, vector<8x124xf32>
    %c32 = arith.constant 32 : index
    %c0_43 = arith.constant 0 : index
    %30 = vector.load %arg8[%c32, %c0_43] : memref<40x128xf32, #tpu.memory_space<vmem>>, vector<8x124xf32>
    tpu.vector_store %arg8[%c32, %c0_43], %29 {strides = array<i32>} : memref<40x128xf32, #tpu.memory_space<vmem>>, vector<8x124xf32>,
    %c0_i32_44 = arith.constant 0 : i32
    %c0_i32_45 = arith.constant 0 : i32
    %c0_i32_46 = arith.constant 0 : i32
    %c0_i32_47 = arith.constant 0 : i32
    %31 = tpu.memref_slice %arg4[%c0_i32_44, %c0_i32_45, %c0_i32_46, %c0_i32_47] : memref<1x1x8x4xf32, #tpu.memory_space<vmem>> -> memref<1x1x8x4xf32, #tpu.memory_space<vmem>>
    %32 = tpu.memref_squeeze %31 : memref<1x1x8x4xf32, #tpu.memory_space<vmem>> -> memref<8x4xf32, #tpu.memory_space<vmem>>
    %c0_48 = arith.constant 0 : index
    %c0_49 = arith.constant 0 : index
    %33 = vector.load %32[%c0_48, %c0_49] : memref<8x4xf32, #tpu.memory_space<vmem>>, vector<8x4xf32>
    %c32_50 = arith.constant 32 : index
    %c124 = arith.constant 124 : index
    %34 = vector.load %arg8[%c32_50, %c124] : memref<40x128xf32, #tpu.memory_space<vmem>>, vector<8x4xf32>
    tpu.vector_store %arg8[%c32_50, %c124], %33 {strides = array<i32>} : memref<40x128xf32, #tpu.memory_space<vmem>>, vector<8x4xf32>,
    %c0_51 = arith.constant 0 : index
    %c0_52 = arith.constant 0 : index
    %35 = vector.load %arg5[%c0_51, %c0_52] : memref<8x40xf32, #tpu.memory_space<vmem>>, vector<8x40xf32>
    %c0_53 = arith.constant 0 : index
    %c0_54 = arith.constant 0 : index
    %36 = vector.load %arg8[%c0_53, %c0_54] : memref<40x128xf32, #tpu.memory_space<vmem>>, vector<40x128xf32>
    %cst = arith.constant dense<0.000000e+00> : vector<8x128xf32>
    %37 = tpu.matmul %35, %36, %cst {dimension_numbers = #tpu.dot_dimension_numbers<[1], [0], [0], [1], [0, 0, 1, 1], [], []>} : vector<8x40xf32>, vector<40x128xf32>, vector<8x128xf32> -> vector<8x128xf32>
    %c0_55 = arith.constant 0 : index
    %c0_56 = arith.constant 0 : index
    %38 = vector.load %arg6[%c0_55, %c0_56] : memref<8x1xf32, #tpu.memory_space<vmem>>, vector<8x1xf32>
    %39 = vector.broadcast %38 : vector<8x1xf32> to vector<8x128xf32>
    %40 = arith.addf %37, %39 : vector<8x128xf32>
    %c0_57 = arith.constant 0 : index
    %c0_58 = arith.constant 0 : index
    %c0_59 = arith.constant 0 : index
    %41 = vector.load %arg7[%c0_57, %c0_58, %c0_59] : memref<1x8x128xf32, #tpu.memory_space<vmem>>, vector<1x8x128xf32>
    %42 = vector.shape_cast %41 : vector<1x8x128xf32> to vector<8x128xf32>
    %43 = vector.shape_cast %40 : vector<8x128xf32> to vector<1x8x128xf32>
    tpu.vector_store %arg7[%c0_57, %c0_58, %c0_59], %43 {strides = array<i32>} : memref<1x8x128xf32, #tpu.memory_space<vmem>>, vector<1x8x128xf32>,
    return
  }
  func.func @transform_0(%arg0: i32, %arg1: i32, %arg2: i32) -> (i32, i32, i32) {
    %c0_i32 = arith.constant 0 : i32
    %c0_i32_0 = arith.constant 0 : i32
    return %arg0, %c0_i32, %arg2 : i32, i32, i32
  }
  func.func @transform_1(%arg0: i32, %arg1: i32, %arg2: i32) -> (i32, i32, i32, i32) {
    %c0_i32 = arith.constant 0 : i32
    %c0_i32_0 = arith.constant 0 : i32
    %c0_i32_1 = arith.constant 0 : i32
    return %arg0, %arg2, %c0_i32, %c0_i32_0 : i32, i32, i32, i32
  }
  func.func @transform_2(%arg0: i32, %arg1: i32, %arg2: i32) -> (i32, i32) {
    %c0_i32 = arith.constant 0 : i32
    %c0_i32_0 = arith.constant 0 : i32
    return %arg1, %c0_i32 : i32, i32
  }
  func.func @transform_3(%arg0: i32, %arg1: i32, %arg2: i32) -> (i32, i32) {
    %c0_i32 = arith.constant 0 : i32
    %c0_i32_0 = arith.constant 0 : i32
    return %arg1, %c0_i32 : i32, i32
  }
  func.func @transform_4(%arg0: i32, %arg1: i32, %arg2: i32) -> (i32, i32, i32) {
    %c0_i32 = arith.constant 0 : i32
    return %arg0, %arg1, %arg2 : i32, i32, i32
  }
}

</mosaic_0001>

<llo_original>
// kernel: tpu_custom_call.1
$region0: #{tpu_custom_call.1}
  #allocation0 [shape = 'u32[]', space=smem, size = 0x4, offset = 0x4, fixed_abs, tag = 'smem constant byte address 0x4 - core index']
  #allocation1 [shape = 'u32[72,128]{1,0:T(1,128)}', space=vmem, size = 0x9000, scoped, tag = 'internal scratch']
  #allocation2 [shape = 'f32[40,128]{1,0:T(8,128)}', space=vmem, size = 0x5000, scoped, tag = 'scratch operand']
  %s0 = inlined_call_operand.hbm [shape: f32[2,8,256], index: 0, kind: input, shape index: {}]
  %s1 = inlined_call_operand.vmem [shape: f32[2,1,8,4], index: 1, kind: input, shape index: {}]
  %s2 = inlined_call_operand.vmem [shape: f32[8,40], index: 2, kind: input, shape index: {}]
  %s3 = inlined_call_operand.vmem [shape: f32[8,1], index: 3, kind: input, shape index: {}]
  %s4 = inlined_call_operand.hbm [shape: f32[2,8,128], index: 4, kind: output, shape index: {}]
  %s5 = sld [smem:[#allocation0]]
  $region53: #{tpu_custom_call.1} parent=0
    _
  %s7 = ssub.s32 1, %s5
  %s8 = scalar_select 0, %s7, %s5
  $region1: #{tpu_custom_call.1} parent=0
    #allocation3 [shape = 'u8[8192]{0}', space=vmem, size = 0x2000, scoped, tag = 'input window, operand 0']
    #allocation4 [shape = 's32[2]{0}', space=sflag, size = 0x8, scoped, tag = 'scoped memory for tpu_custom_call.1']
    #allocation5 [shape = 's32[2]{0}', space=sflag, size = 0x8, scoped, tag = 'scoped memory for tpu_custom_call.1']
    #allocation6 [shape = 'u8[8192]{0}', space=vmem, size = 0x2000, scoped, tag = 'output window, operand 0']
    %9 = vsyncpa [#allocation4], 0
    %s10 = scalar_lea.sflag [#allocation4], 1
    %11 = vsyncpa %s10, 0
    %12 = vsyncpa [#allocation5], 0
    %s13 = scalar_lea.sflag [#allocation5], 1
    %14 = vsyncpa %s13, 0
    loop: start=0, step=1, limit=4
    $region2: #{tpu_custom_call.1} parent=1 // loop_pre_header
      _
    $region3: #{tpu_custom_call.1} parent=1 // loop_header
      %s16 = sphi 0, %s20
      %p17 = scmp.ge.s32.totalorder %s16, 4
      %s23 = sphi 0, %s42
      %s24 = sphi 0, %s38
      %s25 = sphi 0, %s34
      %s26 = sphi 0, %s23
      %s27 = sphi 0, %s24
      %s28 = sphi 0, %s25
      %s29 = sphi 0, %s26
      %s30 = sphi 0, %s27
      %s31 = sphi 0, %s28
      %s47 = sphi 0, %s49
      %s50 = sphi 0, %s47
      %s51 = sphi 0, %s50
      %s67 = sphi 0, %s51
      %s75 = sphi 0, %s77
      %s78 = sphi 0, %s75
      %s79 = sphi 0, %s78
      %s95 = sphi 0, %s79
      %s101 = sphi 0, %s103
      %s104 = sphi 0, %s101
      %s105 = sphi 0, %s104
      %s121 = sphi 0, %s105
      %s127 = sphi 0, %s129
      %s130 = sphi 0, %s127
      %s131 = sphi 0, %s130
      %s147 = sphi 0, %s131
      %s157 = sphi 0, %s159
      %s160 = sphi 0, %s157
      %s161 = sphi 0, %s160
      %s177 = sphi 0, %s161
    $region4: #{tpu_custom_call.1} parent=1 // loop_header_branch
      %19 = sbr.rel (%p17) target = $region8
    $region5: #{tpu_custom_call.1} parent=1 // loop_body
      %s21 = ssub.s32 %s16, 1
      %s22 = ssub.s32 %s16, 2
      %s32 = sadd.s32 1, %s25
      %p33 = scmp.ge.s32.totalorder %s32, 1
      %s34 = scalar_select %p33, 0, %s32
      %s35 = sadd.s32 1, %s24
      %s36 = scalar_select %p33, %s35, %s24
      %p37 = scmp.ge.s32.totalorder %s36, 1
      %s38 = scalar_select %p37, 0, %s36
      %s39 = sadd.s32 1, %s23
      %s40 = scalar_select %p37, %s39, %s23
      %p41 = scmp.ge.s32.totalorder %s40, 2
      %s42 = scalar_select %p41, 0, %s40
      %s43 = ssub.s32 %s23, %s42
      %s44 = ssub.s32 %s25, %s34
      %s45 = sor.u32 %s43, %s44
      %p46 = scmp.eq.s32.totalorder %s45, 0
      %s48 = sadd.s32 %s47, 1
      %s49 = scalar_select %p46, %s47, %s48
      %p52 = pneg %p46
      %p53 = scmp.eq.s32.totalorder %s16, 1
      %p54 = por %p52, %p53
      %p55 = scmp.ne.s32.totalorder %s47, %s50
      %p56 = scmp.eq.s32.totalorder %s16, 0
      %p57 = por %p55, %p56
      %p58 = scmp.ne.s32.totalorder %s47, %s50
      %p59 = scmp.eq.s32.totalorder %s21, 1
      %p60 = por %p58, %p59
      %p61 = scmp.ne.s32.totalorder %s50, %s51
      %p62 = scmp.eq.s32.totalorder %s21, 0
      %p63 = por %p61, %p62
      %p64 = scmp.ne.s32.totalorder %s50, %s51
      %p65 = scmp.eq.s32.totalorder %s22, 1
      %p66 = por %p64, %p65
      %p68 = scmp.ne.s32.totalorder %s51, %s67
      %p69 = scmp.eq.s32.totalorder %s22, 0
      %p70 = por %p68, %p69
      %s71 = ssub.s32 %s23, %s42
      %s72 = ssub.s32 %s25, %s34
      %s73 = sor.u32 %s71, %s72
      %p74 = scmp.eq.s32.totalorder %s73, 0
      %s76 = sadd.s32 %s75, 1
      %s77 = scalar_select %p74, %s75, %s76
      %p80 = pneg %p74
      %p81 = scmp.eq.s32.totalorder %s16, 1
      %p82 = por %p80, %p81
      %p83 = scmp.ne.s32.totalorder %s75, %s78
      %p84 = scmp.eq.s32.totalorder %s16, 0
      %p85 = por %p83, %p84
      %p86 = scmp.ne.s32.totalorder %s75, %s78
      %p87 = scmp.eq.s32.totalorder %s21, 1
      %p88 = por %p86, %p87
      %p89 = scmp.ne.s32.totalorder %s78, %s79
      %p90 = scmp.eq.s32.totalorder %s21, 0
      %p91 = por %p89, %p90
      %p92 = scmp.ne.s32.totalorder %s78, %s79
      %p93 = scmp.eq.s32.totalorder %s22, 1
      %p94 = por %p92, %p93
      %p96 = scmp.ne.s32.totalorder %s79, %s95
      %p97 = scmp.eq.s32.totalorder %s22, 0
      %p98 = por %p96, %p97
      %s99 = ssub.s32 %s24, %s38
      %p100 = scmp.eq.s32.totalorder %s99, 0
      %s102 = sadd.s32 %s101, 1
      %s103 = scalar_select %p100, %s101, %s102
      %p106 = pneg %p100
      %p107 = scmp.eq.s32.totalorder %s16, 1
      %p108 = por %p106, %p107
      %p109 = scmp.ne.s32.totalorder %s101, %s104
      %p110 = scmp.eq.s32.totalorder %s16, 0
      %p111 = por %p109, %p110
      %p112 = scmp.ne.s32.totalorder %s101, %s104
      %p113 = scmp.eq.s32.totalorder %s21, 1
      %p114 = por %p112, %p113
      %p115 = scmp.ne.s32.totalorder %s104, %s105
      %p116 = scmp.eq.s32.totalorder %s21, 0
      %p117 = por %p115, %p116
      %p118 = scmp.ne.s32.totalorder %s104, %s105
      %p119 = scmp.eq.s32.totalorder %s22, 1
      %p120 = por %p118, %p119
      %p122 = scmp.ne.s32.totalorder %s105, %s121
      %p123 = scmp.eq.s32.totalorder %s22, 0
      %p124 = por %p122, %p123
      %s125 = ssub.s32 %s24, %s38
      %p126 = scmp.eq.s32.totalorder %s125, 0
      %s128 = sadd.s32 %s127, 1
      %s129 = scalar_select %p126, %s127, %s128
      %p132 = pneg %p126
      %p133 = scmp.eq.s32.totalorder %s16, 1
      %p134 = por %p132, %p133
      %p135 = scmp.ne.s32.totalorder %s127, %s130
      %p136 = scmp.eq.s32.totalorder %s16, 0
      %p137 = por %p135, %p136
      %p138 = scmp.ne.s32.totalorder %s127, %s130
      %p139 = scmp.eq.s32.totalorder %s21, 1
      %p140 = por %p138, %p139
      %p141 = scmp.ne.s32.totalorder %s130, %s131
      %p142 = scmp.eq.s32.totalorder %s21, 0
      %p143 = por %p141, %p142
      %p144 = scmp.ne.s32.totalorder %s130, %s131
      %p145 = scmp.eq.s32.totalorder %s22, 1
      %p146 = por %p144, %p145
      %p148 = scmp.ne.s32.totalorder %s131, %s147
      %p149 = scmp.eq.s32.totalorder %s22, 0
      %p150 = por %p148, %p149
      %s151 = ssub.s32 %s23, %s42
      %s152 = ssub.s32 %s24, %s38
      %s153 = sor.u32 %s151, %s152
      %s154 = ssub.s32 %s25, %s34
      %s155 = sor.u32 %s153, %s154
      %p156 = scmp.eq.s32.totalorder %s155, 0
      %s158 = sadd.s32 %s157, 1
      %s159 = scalar_select %p156, %s157, %s158
      %p162 = pneg %p156
      %p163 = scmp.eq.s32.totalorder %s16, 1
      %p164 = por %p162, %p163
      %p165 = scmp.ne.s32.totalorder %s157, %s160
      %p166 = scmp.eq.s32.totalorder %s16, 0
      %p167 = por %p165, %p166
      %p168 = scmp.ne.s32.totalorder %s157, %s160
      %p169 = scmp.eq.s32.totalorder %s21, 1
      %p170 = por %p168, %p169
      %p171 = scmp.ne.s32.totalorder %s160, %s161
      %p172 = scmp.eq.s32.totalorder %s21, 0
      %p173 = por %p171, %p172
      %p174 = scmp.ne.s32.totalorder %s160, %s161
      %p175 = scmp.eq.s32.totalorder %s22, 1
      %p176 = por %p174, %p175
      %p178 = scmp.ne.s32.totalorder %s161, %s177
      %p179 = scmp.eq.s32.totalorder %s22, 0
      %p180 = por %p178, %p179
      %p181 = scmp.le.s32.totalorder 1, %s16
      %p182 = scmp.lt.s32.totalorder %s16, 3
      %p183 = pnand %p181, %p182
      %p184 = pneg %p183
      // Predicated region
      $region9: #{tpu_custom_call.1} parent=5 // pred_check
        _
      $region10: #{tpu_custom_call.1} parent=5 // pred_check_branch
        %186 = sbr.rel (%p183) target = $region12
      $region11: #{tpu_custom_call.1} parent=5 // pred_region
        %s187 = ssub.s32 %s16, 1
        // Predicated region
        $region13: #{tpu_custom_call.1} parent=11 // pred_check
          %p188 = pneg %p117
        $region14: #{tpu_custom_call.1} parent=11 // pred_check_branch
          %190 = sbr.rel (%p188) target = $region16
        $region15: #{tpu_custom_call.1} parent=11 // pred_region
          %p191 = scmp.lt.s32.totalorder %s27, 0
          %s192 = scalar_select %p191, %s27, 0
          %s193 = smul.addr %s192, 8
          %s194 = scalar_lea.vmem %s2, %s193
        $region16: #{tpu_custom_call.1} parent=11 // pred_fallthru
          _
        // Predicated region
        $region17: #{tpu_custom_call.1} parent=11 // pred_check
          %p195 = pneg %p143
        $region18: #{tpu_custom_call.1} parent=11 // pred_check_branch
          %197 = sbr.rel (%p195) target = $region20
        $region19: #{tpu_custom_call.1} parent=11 // pred_region
          %p198 = scmp.lt.s32.totalorder %s27, 0
          %s199 = scalar_select %p198, %s27, 0
          %s200 = smul.addr %s199, 8
          %s201 = scalar_lea.vmem %s3, %s200
        $region20: #{tpu_custom_call.1} parent=11 // pred_fallthru
          _
      $region12: #{tpu_custom_call.1} parent=5 // pred_fallthru
        _
      %p202 = scmp.lt.s32.totalorder %s16, 2
      // Predicated region
      $region21: #{tpu_custom_call.1} parent=5 // pred_check
        %p203 = pneg %p202
      $region22: #{tpu_custom_call.1} parent=5 // pred_check_branch
        %205 = sbr.rel (%p203) target = $region24
      $region23: #{tpu_custom_call.1} parent=5 // pred_region
        // Predicated region
        $region25: #{tpu_custom_call.1} parent=23 // pred_check
          %p206 = pneg %p57
        $region26: #{tpu_custom_call.1} parent=23 // pred_check_branch
          %208 = sbr.rel (%p206) target = $region28
        $region27: #{tpu_custom_call.1} parent=23 // pred_region
          %s209 = sand.u32 %s47, 1
          %s210 = scalar_lea.sflag [#allocation4], %s209
          %s211 = sand.u32 %s47, 1
          %s212 = smul.addr %s211, 8
          %s213 = scalar_lea.vmem [#allocation3], %s212
          %215 = vsyncadd %s210, 0
          %s216 = smul.addr %s23, 2
          %s217 = sadd.s32 %s25, %s216
          %s218 = smul.addr %s217, 8
          %s219 = scalar_lea.hbm %s0, %s218
          %s221 = sshll.u32 %s219, 4
          %s222 = int_to_ptr.hbm [resolvable:$true] %s221
          %s223 = sshll.u32 %s213, 4
          %s224 = int_to_ptr.vmem [resolvable:$true] %s223
          %226 = dma.hbm_to_vmem [thread:$0]  %s222, 128, %s224, %s210
        $region28: #{tpu_custom_call.1} parent=23 // pred_fallthru
          _
        // Predicated region
        $region29: #{tpu_custom_call.1} parent=23 // pred_check
          %p227 = pneg %p85
        $region30: #{tpu_custom_call.1} parent=23 // pred_check_branch
          %229 = sbr.rel (%p227) target = $region32
        $region31: #{tpu_custom_call.1} parent=23 // pred_region
          %p230 = scmp.lt.s32.totalorder %s23, 1
          %s231 = scalar_select %p230, %s23, 1
          %p232 = scmp.lt.s32.totalorder %s25, 0
          %s233 = scalar_select %p232, %s25, 0
          %s234 = sadd.s32 %s233, %s231
          %s235 = smul.addr %s234, 8
          %s236 = scalar_lea.vmem %s1, %s235
        $region32: #{tpu_custom_call.1} parent=23 // pred_fallthru
          _
      $region24: #{tpu_custom_call.1} parent=5 // pred_fallthru
        _
      %p237 = scmp.le.s32.totalorder 1, %s16
      %p238 = scmp.lt.s32.totalorder %s16, 3
      %p239 = pnand %p237, %p238
      %p240 = pneg %p239
      // Predicated region
      $region33: #{tpu_custom_call.1} parent=5 // pred_check
        _
      $region34: #{tpu_custom_call.1} parent=5 // pred_check_branch
        %242 = sbr.rel (%p239) target = $region36
      $region35: #{tpu_custom_call.1} parent=5 // pred_region
        %s243 = ssub.s32 %s16, 1
        %s244 = sand.u32 %s50, 1
        %s245 = scalar_lea.sflag [#allocation4], %s244
        %s246 = sand.u32 %s50, 1
        %s247 = smul.addr %s246, 8
        %s248 = scalar_lea.vmem [#allocation3], %s247
        // Predicated region
        $region37: #{tpu_custom_call.1} parent=35 // pred_check
          %p249 = pneg %p63
        $region38: #{tpu_custom_call.1} parent=35 // pred_check_branch
          %251 = sbr.rel (%p249) target = $region40
        $region39: #{tpu_custom_call.1} parent=35 // pred_region
          %253 = dma.done %s245, 128
        $region40: #{tpu_custom_call.1} parent=35 // pred_fallthru
          _
        %s254 = sand.u32 %s50, 1
        %s255 = scalar_lea.sflag [#allocation4], %s254
        %s256 = sand.u32 %s50, 1
        %s257 = smul.addr %s256, 8
        %s258 = scalar_lea.vmem [#allocation3], %s257
        %p259 = pneg %p63
        %p260 = pneg %p60
        %p261 = scmp.lt.s32.totalorder %s26, 1
        %s262 = scalar_select %p261, %s26, 1
        %p263 = scmp.lt.s32.totalorder %s28, 0
        %s264 = scalar_select %p263, %s28, 0
        %s265 = sadd.s32 %s264, %s262
        %s266 = smul.addr %s265, 8
        %s267 = scalar_lea.vmem %s1, %s266
        %p268 = pneg %p91
        %p269 = pneg %p88
        %p270 = scmp.lt.s32.totalorder %s27, 0
        %s271 = scalar_select %p270, %s27, 0
        %s272 = smul.addr %s271, 8
        %s273 = scalar_lea.vmem %s2, %s272
        %p274 = pneg %p117
        %p275 = pneg %p114
        %p276 = scmp.lt.s32.totalorder %s27, 0
        %s277 = scalar_select %p276, %s27, 0
        %s278 = smul.addr %s277, 8
        %s279 = scalar_lea.vmem %s3, %s278
        %p280 = pneg %p143
        %p281 = pneg %p140
        %p282 = pneg %p173
        %p283 = pneg %p170
        %s284 = sand.u32 %s160, 1
        %s285 = scalar_lea.sflag [#allocation5], %s284
        %s286 = sand.u32 %s160, 1
        %s287 = smul.addr %s286, 8
        %s288 = scalar_lea.vmem [#allocation6], %s287
        %p289 = scmp.lt.s32.totalorder %s26, 1
        %s290 = scalar_select %p289, %s26, 1
        %p291 = scmp.lt.s32.totalorder %s28, 0
        %s292 = scalar_select %p291, %s28, 0
        %s293 = sadd.s32 %s292, %s290
        %s294 = smul.addr %s293, 8
        %s295 = scalar_lea.vmem %s1, %s294
        %p296 = scmp.lt.s32.totalorder %s27, 0
        %s297 = scalar_select %p296, %s27, 0
        %s298 = smul.addr %s297, 8
        %s299 = scalar_lea.vmem %s2, %s298
        %p300 = scmp.lt.s32.totalorder %s27, 0
        %s301 = scalar_select %p300, %s27, 0
        %s302 = smul.addr %s301, 8
        %s303 = scalar_lea.vmem %s3, %s302
        %v304 = vld [vmem:[%s248] sm:$0xff]
        %305 = vst [vmem:[#allocation2] sm:$0xff] %v304
        %v306 = vld [vmem:[%s248] sm:$0xff]
        %308 = vrot.lane.b32.xlu0 %v306, 127
        %v309 = vpop.permute.xlu0 %308
        %vm311 = vcmask 1039360
        %312 = vst.msk [vmem:[#allocation2 + $0x8] sm:$0xff] %vm311, %v309
        %v313 = vld [vmem:[%s295] sm:$0xff]
        %315 = vrot.lane.b32.xlu0 %v313, 127
        %v316 = vpop.permute.xlu0 %315
        %vm318 = vcmask 1048568
        %319 = vst.msk [vmem:[#allocation2 + $0x8] sm:$0xff] %vm318, %v316
        %v320 = vld [vmem:[%s248] sm:$0xff]
        %322 = vrot.lane.b32.xlu0 %v320, 126
        %v323 = vpop.permute.xlu0 %322
        %vm325 = vcmask 1031168
        %326 = vst.msk [vmem:[#allocation2 + $0x10] sm:$0xff] %vm325, %v323
        %v327 = vld [vmem:[%s295] sm:$0xff]
        %329 = vrot.lane.b32.xlu0 %v327, 126
        %v330 = vpop.permute.xlu0 %329
        %vm332 = vcmask 1048560
        %333 = vst.msk [vmem:[#allocation2 + $0x10] sm:$0xff] %vm332, %v330
        %v334 = vld [vmem:[%s248] sm:$0xff]
        %336 = vrot.lane.b32.xlu0 %v334, 125
        %v337 = vpop.permute.xlu0 %336
        %vm339 = vcmask 1022976
        %340 = vst.msk [vmem:[#allocation2 + $0x18] sm:$0xff] %vm339, %v337
        %v341 = vld [vmem:[%s295] sm:$0xff]
        %343 = vrot.lane.b32.xlu0 %v341, 125
        %v344 = vpop.permute.xlu0 %343
        %vm346 = vcmask 1048552
        %347 = vst.msk [vmem:[#allocation2 + $0x18] sm:$0xff] %vm346, %v344
        %v348 = vld [vmem:[%s248] sm:$0xff]
        %350 = vrot.lane.b32.xlu0 %v348, 124
        %v351 = vpop.permute.xlu0 %350
        %vm353 = vcmask 1014784
        %354 = vst.msk [vmem:[#allocation2 + $0x20] sm:$0xff] %vm353, %v351
        %v355 = vld [vmem:[%s295] sm:$0xff]
        %357 = vrot.lane.b32.xlu0 %v355, 124
        %v358 = vpop.permute.xlu0 %357
        %vm360 = vcmask 1048544
        %361 = vst.msk [vmem:[#allocation2 + $0x20] sm:$0xff] %vm360, %v358
        %v362 = vld [vmem:[%s299] sm:$0xff]
        %v363 = vld [vmem:[#allocation2] sm:$0xff]
        %v364 = vld [vmem:[#allocation2 + $0x8] sm:$0xff]
        %v365 = vld [vmem:[#allocation2 + $0x10] sm:$0xff]
        %v366 = vld [vmem:[#allocation2 + $0x18] sm:$0xff]
        %v367 = vld [vmem:[#allocation2 + $0x20] sm:$0xff]
        %v368 = vld [vmem:[%s303] sm:$0xff]
        %370 = vset.pattern.permute.xlu0 0
        %371 = vperm.xlu0 %370, %v368
        %v372 = vpop.permute.xlu0 %371
        %vm374 = vcmask 326656
        %v376 = vsel %vm374, %v362, 0
        %378 = vmatpush.msra.mxu0 0.0
        %379 = vmatpush.msra.mxu0 0.0
        %380 = vmatpush.msra.mxu0 0.0
        %381 = vmatpush.msra.mxu0 0.0
        %382 = vmatpush.msra.mxu0 0.0
        %383 = vmatpush.msra.mxu0 0.0
        %384 = vmatpush.msra.mxu0 0.0
        %385 = vmatpush.msra.mxu0 0.0
        %386 = vmatpush.msra.mxu0 0.0
        %387 = vmatpush.msra.mxu0 0.0
        %388 = vmatpush.msra.mxu0 0.0
        %389 = vmatpush.msra.mxu0 %v367
        %390 = vmatpush.msra.mxu0 %v366
        %391 = vmatpush.msra.mxu0 %v365
        %392 = vmatpush.msra.mxu0 %v364
        %393 = vmatpush.msra.mxu0 %v363
        %394 = vmatmul.f32.gmra.mxu0 %v376
        %v395 = vpop.f32.mrf.mxu0
        %v396 = vadd.f32 %v372, %v395
        %397 = vdwg.mxu0
        %398 = vst [vmem:[%s288] sm:$0xff] %v396
        %s399 = sand.u32 %s160, 1
        %s400 = scalar_lea.sflag [#allocation5], %s399
        %s401 = sand.u32 %s160, 1
        %s402 = smul.addr %s401, 8
        %s403 = scalar_lea.vmem [#allocation6], %s402
        // Predicated region
        $region41: #{tpu_custom_call.1} parent=35 // pred_check
          %p404 = pneg %p170
        $region42: #{tpu_custom_call.1} parent=35 // pred_check_branch
          %406 = sbr.rel (%p404) target = $region44
        $region43: #{tpu_custom_call.1} parent=35 // pred_region
          %408 = vsyncadd %s400, 0
          %s409 = sadd.s32 %s28, %s27
          %s410 = sadd.s32 %s409, %s26
          %s411 = smul.addr %s410, 8
          %s412 = scalar_lea.hbm %s4, %s411
          %s414 = sshll.u32 %s403, 4
          %s415 = int_to_ptr.vmem [resolvable:$true] %s414
          %s416 = sshll.u32 %s412, 4
          %s417 = int_to_ptr.hbm [resolvable:$true] %s416
          %419 = dma.vmem_to_hbm [thread:$0]  %s415, 128, %s417, %s400
        $region44: #{tpu_custom_call.1} parent=35 // pred_fallthru
          _
      $region36: #{tpu_custom_call.1} parent=5 // pred_fallthru
        _
      %p420 = scmp.le.s32.totalorder 2, %s16
      // Predicated region
      $region45: #{tpu_custom_call.1} parent=5 // pred_check
        %p421 = pneg %p420
      $region46: #{tpu_custom_call.1} parent=5 // pred_check_branch
        %423 = sbr.rel (%p421) target = $region48
      $region47: #{tpu_custom_call.1} parent=5 // pred_region
        %s424 = ssub.s32 %s16, 2
        // Predicated region
        $region49: #{tpu_custom_call.1} parent=47 // pred_check
          %p425 = pneg %p176
        $region50: #{tpu_custom_call.1} parent=47 // pred_check_branch
          %427 = sbr.rel (%p425) target = $region52
        $region51: #{tpu_custom_call.1} parent=47 // pred_region
          %s428 = sand.u32 %s161, 1
          %s429 = scalar_lea.sflag [#allocation5], %s428
          %s430 = sand.u32 %s161, 1
          %s431 = smul.addr %s430, 8
          %s432 = scalar_lea.vmem [#allocation6], %s431
          %434 = dma.done %s429, 128
        $region52: #{tpu_custom_call.1} parent=47 // pred_fallthru
          _
      $region48: #{tpu_custom_call.1} parent=5 // pred_fallthru
        _
    $region6: #{tpu_custom_call.1} parent=1 // loop_footer
      %s20 = sadd.s32 1, %s16
    $region7: #{tpu_custom_call.1} parent=1 // loop_footer_branch
      %15 = sbr.rel target = $region3
    $region8: #{tpu_custom_call.1} parent=1 // loop_exit
      _
    %435 = vsyncpa [#allocation4], 1
    %s436 = scalar_lea.sflag [#allocation4], 1
    %437 = vsyncpa %s436, 1
    %438 = vsyncpa [#allocation5], 1
    %s439 = scalar_lea.sflag [#allocation5], 1
    %440 = vsyncpa %s439, 1

</llo_original>
